<compile_context>
chip_gen: v7x
topology: tpu7x:2x2x1
jax: 0.10.0
libtpu: 0.0.40
codegen_flags: <defaults>
</compile_context>

<pallas_src>
import functools
import math

import jax
import jax.numpy as jnp
from jax import lax
from jax.experimental import pallas as pl
from jax.experimental.pallas import tpu as pltpu

ALPHA = 0.8
GAMMA = 1.5

_LANES = 128
_SUBLANES = 8
# Combined bytes of (x tile + t tile) staged per grid step (single buffer).
_STEP_INPUT_BYTES = 16 << 20
_LN2 = math.log(2.0)


def _round_up(x, m):
    return (x + m - 1) // m * m


def _focal_bce_sum_kernel(x_ref, t_ref, o_ref, *, valid_rows_last, needs_row_mask):
    """Accumulates the elementwise BCE-with-logits sum into an (8,128) f32 block."""
    i = pl.program_id(0)

    @pl.when(i == 0)
    def _():
        o_ref[...] = jnp.zeros_like(o_ref)

    x = x_ref[...].astype(jnp.float32)
    t = t_ref[...].astype(jnp.float32)
    # Numerically stable BCE-with-logits (matches torch):
    #   max(x, 0) - x*t + log(1 + exp(-|x|))
    bce = jnp.maximum(x, 0.0) - x * t + jnp.log1p(jnp.exp(-jnp.abs(x)))

    def accumulate(vals):
        # (tile_rows,128) -> (tile_rows//8, 8, 128) is layout-free; summing the
        # leading axis is pure VPU work (no per-step cross-sublane XLU reduce).
        o_ref[...] += vals.reshape(-1, _SUBLANES, _LANES).sum(axis=0)

    if needs_row_mask:
        last = pl.num_programs(0) - 1

        @pl.when(i == last)
        def _():
            # Only the boundary tile pays for the mask: rows beyond the end of
            # the array are unspecified VMEM contents and must not contribute.
            row_iota = lax.broadcasted_iota(jnp.int32, bce.shape, 0)
            accumulate(jnp.where(row_iota < valid_rows_last, bce, 0.0))

        @pl.when(i != last)
        def _():
            accumulate(bce)
    else:
        accumulate(bce)


def focal_loss(inputs, targets, alpha=ALPHA, gamma=GAMMA):
    """Binary focal loss on logits. inputs/targets: same-shape arrays. Scalar f32."""
    assert inputs.shape == targets.shape
    total = int(inputs.size)
    assert total > 0
    x_isz = jnp.dtype(inputs.dtype).itemsize
    t_isz = jnp.dtype(targets.dtype).itemsize

    x = inputs.reshape(-1)
    t = targets.reshape(-1)

    # Pad only when the element count is not lane-aligned, and only by < 128
    # zeros; their known ln(2)-each contribution is subtracted below.
    pad = (-total) % _LANES
    if pad:
        x = jnp.pad(x, (0, pad))
        t = jnp.pad(t, (0, pad))
    rows = (total + pad) // _LANES

    # Row tile: multiple of the sublane packing granularity of the narrowest
    # dtype, sized so one grid step stages ~_STEP_INPUT_BYTES of inputs.
    row_align = max(_SUBLANES, 32 // max(1, min(x_isz, t_isz, 4)))
    budget_rows = max(_STEP_INPUT_BYTES // (_LANES * (x_isz + t_isz)), row_align)
    budget_rows -= budget_rows % row_align
    tile_rows = min(_round_up(rows, row_align), budget_rows)
    num_tiles = pl.cdiv(rows, tile_rows)
    valid_rows_last = rows - (num_tiles - 1) * tile_rows
    needs_row_mask = valid_rows_last != tile_rows  # boundary block partially OOB

    x2 = x.reshape(rows, _LANES)
    t2 = t.reshape(rows, _LANES)

    kernel = functools.partial(
        _focal_bce_sum_kernel,
        valid_rows_last=valid_rows_last,
        needs_row_mask=needs_row_mask,
    )

    # 2 inputs x 2 pipeline buffers of the chosen tile + headroom; capped well
    # under v7x's 64 MiB per-TC physical VMEM.
    tile_in_bytes = tile_rows * _LANES * (x_isz + t_isz)
    vmem_limit = int(min(max(2 * tile_in_bytes + (4 << 20), 16 << 20), 48 << 20))

    partial_sums = pl.pallas_call(
        kernel,
        out_shape=jax.ShapeDtypeStruct((_SUBLANES, _LANES), jnp.float32),
        grid_spec=pltpu.PrefetchScalarGridSpec(
            num_scalar_prefetch=0,
            grid=(num_tiles,),
            in_specs=[
                pl.BlockSpec((tile_rows, _LANES), lambda i: (i, 0)),
                pl.BlockSpec((tile_rows, _LANES), lambda i: (i, 0)),
            ],
            out_specs=pl.BlockSpec((_SUBLANES, _LANES), lambda i: (0, 0)),
        ),
        compiler_params=pltpu.CompilerParams(
            dimension_semantics=("arbitrary",),
            vmem_limit_bytes=vmem_limit,
        ),
        cost_estimate=pl.CostEstimate(
            flops=5 * total,
            transcendentals=2 * total,
            bytes_accessed=rows * _LANES * (x_isz + t_isz) + _SUBLANES * _LANES * 4,
        ),
    )(x2, t2)

    # Single cross-lane/sublane reduce + focal transform outside the kernel.
    bce_sum = jnp.sum(partial_sums)
    if pad:
        bce_sum = bce_sum - jnp.float32(pad * _LN2)  # remove zero-padding's ln(2) each
    mean_bce = bce_sum / jnp.float32(total)
    pt = jnp.exp(-mean_bce)
    return jnp.float32(alpha) * (1.0 - pt) ** jnp.float32(gamma) * mean_bce


def _reference_focal_loss(inputs, targets, alpha=ALPHA, gamma=GAMMA):
    x = inputs.astype(jnp.float32)
    t = targets.astype(jnp.float32)
    bce = jnp.mean(jnp.maximum(x, 0.0) - x * t + jnp.log1p(jnp.exp(-jnp.abs(x))))
    pt = jnp.exp(-bce)
    return alpha * (1.0 - pt) ** gamma * bce


if __name__ == "__main__":
    key = jax.random.PRNGKey(0)
    k1, k2, k3, k4 = jax.random.split(key, 4)

    # NCHW: batch=2, channels=4, spatial=16x16 (lane-aligned -> no pad, no mask).
    x = jax.random.normal(k1, (2, 4, 16, 16), dtype=jnp.float32)
    targets = (jax.random.uniform(k2, (2, 4, 16, 16)) > 0.5).astype(jnp.float32)
    out = jax.block_until_ready(focal_loss(x, targets))
    ref = _reference_focal_loss(x, targets)
    assert jnp.allclose(out, ref, rtol=1e-5, atol=1e-6), (out, ref)

    # Odd shape: exercises the <128-element lane pad (constant ln(2) fixup) and
    # the pl.when-gated boundary-row mask (partially OOB last block).
    x_odd = jax.random.normal(k3, (2, 3, 15, 17), dtype=jnp.float32)
    t_odd = (jax.random.uniform(k4, (2, 3, 15, 17)) > 0.5).astype(jnp.float32)
    out_odd = jax.block_until_ready(focal_loss(x_odd, t_odd))
    ref_odd = _reference_focal_loss(x_odd, t_odd)
    assert jnp.allclose(out_odd, ref_odd, rtol=1e-5, atol=1e-6), (out_odd, ref_odd)

    # Narrow dtypes pass straight through (in-kernel f32 cast; less HBM traffic).
    x_bf = x.astype(jnp.bfloat16)
    t_bf = targets.astype(jnp.bfloat16)
    out_bf = jax.block_until_ready(focal_loss(x_bf, t_bf))
    ref_bf = _reference_focal_loss(x_bf, t_bf)
    assert jnp.allclose(out_bf, ref_bf, rtol=1e-3, atol=1e-5), (out_bf, ref_bf)

    print("KERNEL_OK")
</pallas_src>

<mosaic_0001>
module attributes {stable_mosaic.version = 11 : i64} {
  func.func @_focal_bce_sum_kernel(%arg0: i32, %arg1: memref<16x128xf32, #tpu.memory_space<vmem>>, %arg2: memref<16x128xf32, #tpu.memory_space<vmem>>, %arg3: memref<8x128xf32, #tpu.memory_space<vmem>>) attributes {dimension_semantics = [#tpu.dimension_semantics<arbitrary>], iteration_bounds = array<i64: 1>, scalar_prefetch = 0 : i64, scratch_operands = 0 : i64, tpu.core_type = #tpu.core_type<tc>, window_params = [{transform_indices = @transform_0, window_bounds = array<i64: 16, 128>}, {transform_indices = @transform_1, window_bounds = array<i64: 16, 128>}, {pipeline_mode = #tpu.pipeline_mode<synchronous>, transform_indices = @transform_2, window_bounds = array<i64: 8, 128>}]} {
    %c0_i32 = arith.constant 0 : i32
    %0 = arith.cmpi eq, %arg0, %c0_i32 : i32
    %1 = arith.extui %0 : i1 to i32
    %c0_i32_0 = arith.constant 0 : i32
    %2 = arith.cmpi ne, %1, %c0_i32_0 : i32
    scf.if %2 {
      %cst_10 = arith.constant 0.000000e+00 : f32
      %20 = vector.broadcast %cst_10 : f32 to vector<8x128xf32>
      %c0_11 = arith.constant 0 : index
      %c0_12 = arith.constant 0 : index
      %21 = vector.load %arg3[%c0_11, %c0_12] : memref<8x128xf32, #tpu.memory_space<vmem>>, vector<8x128xf32>
      tpu.vector_store %arg3[%c0_11, %c0_12], %20 {strides = array<i32>} : memref<8x128xf32, #tpu.memory_space<vmem>>, vector<8x128xf32>,
    } else {
    }
    %c0 = arith.constant 0 : index
    %c0_1 = arith.constant 0 : index
    %3 = vector.load %arg1[%c0, %c0_1] : memref<16x128xf32, #tpu.memory_space<vmem>>, vector<16x128xf32>
    %c0_2 = arith.constant 0 : index
    %c0_3 = arith.constant 0 : index
    %4 = vector.load %arg2[%c0_2, %c0_3] : memref<16x128xf32, #tpu.memory_space<vmem>>, vector<16x128xf32>
    %cst = arith.constant 0.000000e+00 : f32
    %5 = vector.broadcast %cst : f32 to vector<16x128xf32>
    %6 = arith.maximumf %3, %5 : vector<16x128xf32>
    %7 = arith.mulf %3, %4 : vector<16x128xf32>
    %8 = arith.subf %6, %7 : vector<16x128xf32>
    %9 = math.absf %3 : vector<16x128xf32>
    %cst_4 = arith.constant 0.000000e+00 : f32
    %10 = vector.broadcast %cst_4 : f32 to vector<16x128xf32>
    %11 = arith.subf %10, %9 : vector<16x128xf32>
    %12 = math.exp %11 : vector<16x128xf32>
    %13 = math.log1p %12 : vector<16x128xf32>
    %14 = arith.addf %8, %13 : vector<16x128xf32>
    %c0_5 = arith.constant 0 : index
    %c0_6 = arith.constant 0 : index
    %15 = vector.load %arg3[%c0_5, %c0_6] : memref<8x128xf32, #tpu.memory_space<vmem>>, vector<8x128xf32>
    %16 = vector.shape_cast %14 : vector<16x128xf32> to vector<2x8x128xf32>
    %cst_7 = arith.constant dense<0.000000e+00> : vector<8x128xf32>
    %17 = vector.multi_reduction <add>, %16, %cst_7 [0] : vector<2x8x128xf32> to vector<8x128xf32>
    %18 = arith.addf %15, %17 : vector<8x128xf32>
    %c0_8 = arith.constant 0 : index
    %c0_9 = arith.constant 0 : index
    %19 = vector.load %arg3[%c0_8, %c0_9] : memref<8x128xf32, #tpu.memory_space<vmem>>, vector<8x128xf32>
    tpu.vector_store %arg3[%c0_8, %c0_9], %18 {strides = array<i32>} : memref<8x128xf32, #tpu.memory_space<vmem>>, vector<8x128xf32>,
    return
  }
  func.func @transform_0(%arg0: i32) -> (i32, i32) {
    %c0_i32 = arith.constant 0 : i32
    %c0_i32_0 = arith.constant 0 : i32
    return %arg0, %c0_i32 : i32, i32
  }
  func.func @transform_1(%arg0: i32) -> (i32, i32) {
    %c0_i32 = arith.constant 0 : i32
    %c0_i32_0 = arith.constant 0 : i32
    return %arg0, %c0_i32 : i32, i32
  }
  func.func @transform_2(%arg0: i32) -> (i32, i32) {
    %c0_i32 = arith.constant 0 : i32
    %c0_i32_0 = arith.constant 0 : i32
    %c0_i32_1 = arith.constant 0 : i32
    return %c0_i32, %c0_i32_0 : i32, i32
  }
}

</mosaic_0001>

<llo_original>
// kernel: tpu_custom_call.1
$region0: #{tpu_custom_call.1}
  #allocation0 [shape = 'u32[]', space=smem, size = 0x4, offset = 0x4, fixed_abs, tag = 'smem constant byte address 0x4 - core index']
  #allocation1 [shape = 'u32[144,128]{1,0:T(1,128)}', space=vmem, size = 0x12000, scoped, tag = 'internal scratch']
  %s0 = inlined_call_operand.hbm [shape: f32[16,128], index: 0, kind: input, shape index: {}]
  %s1 = inlined_call_operand.hbm [shape: f32[16,128], index: 1, kind: input, shape index: {}]
  %s2 = inlined_call_operand.hbm [shape: f32[8,128], index: 2, kind: output, shape index: {}]
  %s3 = sld [smem:[#allocation0]]
  $region30: #{tpu_custom_call.1} parent=0
    _
  %s5 = ssub.s32 1, %s3
  %s6 = scalar_select 0, %s5, %s3
  $region1: #{tpu_custom_call.1} parent=0
    #allocation2 [shape = 'u8[8192]{0}', space=vmem, size = 0x2000, scoped, tag = 'input window, operand 0, single buffered']
    #allocation3 [shape = 's32[1]{0}', space=sflag, size = 0x4, scoped, tag = 'scoped memory for tpu_custom_call.1']
    #allocation4 [shape = 's32[1]{0}', space=sflag, size = 0x4, scoped, tag = 'scoped memory for tpu_custom_call.1']
    #allocation5 [shape = 'u8[8192]{0}', space=vmem, size = 0x2000, scoped, tag = 'input window, operand 1, single buffered']
    #allocation6 [shape = 's32[1]{0}', space=sflag, size = 0x4, scoped, tag = 'scoped memory for tpu_custom_call.1']
    #allocation7 [shape = 'u8[4096]{0}', space=vmem, size = 0x1000, scoped, tag = 'output window, operand 0, single buffered']
    %7 = vsyncpa [#allocation3], 0
    %8 = vsyncpa [#allocation6], 0
    %9 = vsyncpa [#allocation4], 0
    // Predicated region
    $region2: #{tpu_custom_call.1} parent=1 // pred_check
      _
    $region3: #{tpu_custom_call.1} parent=1 // pred_check_branch
      %11 = sbr.rel (0) target = $region5
    $region4: #{tpu_custom_call.1} parent=1 // pred_region
      %s13 = ssub.s32 256, 256
      %14 = vsyncadd [#allocation3], %s13
      %s15 = sshll.u32 [#allocation2], 4
      %s16 = int_to_ptr.vmem [resolvable:$true] %s15
      %21 = dma.hbm_to_vmem [thread:$0]  %s0, 256, %s16, [#allocation3], 128, 128, 8
    $region5: #{tpu_custom_call.1} parent=1 // pred_fallthru
      _
    // Predicated region
    $region6: #{tpu_custom_call.1} parent=1 // pred_check
      _
    $region7: #{tpu_custom_call.1} parent=1 // pred_check_branch
      %23 = sbr.rel (0) target = $region9
    $region8: #{tpu_custom_call.1} parent=1 // pred_region
      %s25 = ssub.s32 256, 256
      %26 = vsyncadd [#allocation6], %s25
      %s27 = sshll.u32 [#allocation5], 4
      %s28 = int_to_ptr.vmem [resolvable:$true] %s27
      %33 = dma.hbm_to_vmem [thread:$0]  %s1, 256, %s28, [#allocation6], 128, 128, 8
    $region9: #{tpu_custom_call.1} parent=1 // pred_fallthru
      _
    // Predicated region
    $region10: #{tpu_custom_call.1} parent=1 // pred_check
      _
    $region11: #{tpu_custom_call.1} parent=1 // pred_check_branch
      %35 = sbr.rel (0) target = $region13
    $region12: #{tpu_custom_call.1} parent=1 // pred_region
      %36 = dma.done [#allocation3], 256
    $region13: #{tpu_custom_call.1} parent=1 // pred_fallthru
      _
    // Predicated region
    $region14: #{tpu_custom_call.1} parent=1 // pred_check
      _
    $region15: #{tpu_custom_call.1} parent=1 // pred_check_branch
      %38 = sbr.rel (0) target = $region17
    $region16: #{tpu_custom_call.1} parent=1 // pred_region
      %39 = dma.done [#allocation6], 256
    $region17: #{tpu_custom_call.1} parent=1 // pred_fallthru
      _
    %p40 = scmp.eq.s32.totalorder 0, 0
    // Predicated region
    $region18: #{tpu_custom_call.1} parent=1 // pred_check
      %p41 = pneg %p40
    $region19: #{tpu_custom_call.1} parent=1 // pred_check_branch
      %43 = sbr.rel (%p41) target = $region21
    $region20: #{tpu_custom_call.1} parent=1 // pred_region
      %44 = vst [vmem:[#allocation7] sm:$0xff] 0.0
    $region21: #{tpu_custom_call.1} parent=1 // pred_fallthru
      _
    %v45 = vld [vmem:[#allocation2] sm:$0xff]
    %v46 = vld [vmem:[#allocation2 + $0x8] sm:$0xff]
    %v47 = vld [vmem:[#allocation5] sm:$0xff]
    %v48 = vld [vmem:[#allocation5 + $0x8] sm:$0xff]
    %v49 = vmax.f32 %v45, 0.0
    %v50 = vmax.f32 %v46, 0.0
    %v51 = vmul.f32 %v45, %v47
    %v52 = vmul.f32 %v46, %v48
    %v53 = vsub.f32 %v49, %v51
    %v54 = vsub.f32 %v50, %v52
    %v55 = vand.u32 2147483647, %v45
    %v56 = vand.u32 2147483647, %v46
    %v57 = vsub.f32 0.0, %v55
    %v58 = vsub.f32 0.0, %v56
    %v59 = vmul.f32 %v57, 1.442695
    %v60 = vpow.pop %v59
    %v61 = vmul.f32 %v58, 1.442695
    %v62 = vpow.pop %v61
    %v63 = vadd.f32 %v60, 1.0
    %v64 = vlog2.pop %v63
    %v65 = vmul.f32 %v64, 0.6931472
    %v66 = vmul.f32 -0.5, %v60
    %v67 = vadd.f32 %v66, 1.0
    %v68 = vmul.f32 %v67, %v60
    %v69 = vand.u32 2147483647, %v60
    %vm70 = vcmp.lt.f32.partialorder %v69, 0.0004427343
    %v71 = vsel %vm70, %v68, %v65
    %v72 = vadd.f32 %v62, 1.0
    %v73 = vlog2.pop %v72
    %v74 = vmul.f32 %v73, 0.6931472
    %v75 = vmul.f32 -0.5, %v62
    %v76 = vadd.f32 %v75, 1.0
    %v77 = vmul.f32 %v76, %v62
    %v78 = vand.u32 2147483647, %v62
    %vm79 = vcmp.lt.f32.partialorder %v78, 0.0004427343
    %v80 = vsel %vm79, %v77, %v74
    %v81 = vadd.f32 %v53, %v71
    %v82 = vadd.f32 %v54, %v80
    %v83 = vld [vmem:[#allocation7] sm:$0xff]
    %v84 = vadd.f32 %v81, %v82
    %v85 = vadd.f32 %v83, %v84
    %86 = vst [vmem:[#allocation7] sm:$0xff] %v85
    // Predicated region
    $region22: #{tpu_custom_call.1} parent=1 // pred_check
      _
    $region23: #{tpu_custom_call.1} parent=1 // pred_check_branch
      %88 = sbr.rel (0) target = $region25
    $region24: #{tpu_custom_call.1} parent=1 // pred_region
      %s90 = ssub.s32 128, 128
      %91 = vsyncadd [#allocation4], %s90
      %s93 = sshll.u32 [#allocation7], 4
      %s94 = int_to_ptr.vmem [resolvable:$true] %s93
      %96 = dma.vmem_to_hbm [thread:$0]  %s94, 128, %s2, [#allocation4]
    $region25: #{tpu_custom_call.1} parent=1 // pred_fallthru
      _
    // Predicated region
    $region26: #{tpu_custom_call.1} parent=1 // pred_check
      _
    $region27: #{tpu_custom_call.1} parent=1 // pred_check_branch
      %98 = sbr.rel (0) target = $region29
    $region28: #{tpu_custom_call.1} parent=1 // pred_region
      %99 = dma.done [#allocation4], 128
    $region29: #{tpu_custom_call.1} parent=1 // pred_fallthru
      _
    %100 = vsyncpa [#allocation3], 1
    %101 = vsyncpa [#allocation6], 1
    %102 = vsyncpa [#allocation4], 1

</llo_original>
